<compile_context>
chip_gen: v5e
topology: v5e:2x2
jax: 0.10.0
libtpu: 0.0.40
codegen_flags: <defaults>
</compile_context>

<pallas_src>
import functools

import jax
import jax.numpy as jnp
from jax.experimental import pallas as pl
from jax.experimental.pallas import tpu as pltpu

LANE = 128


def _round_up(x, m):
    return (x + m - 1) // m * m


def _choose_tile(B, tb_max=512):
    """Balanced batch tiles, >=2 when B allows (keeps v7x's 2nd TC busy)."""
    n_tiles = max(2, -(-B // tb_max))
    TB = _round_up(-(-B // n_tiles), 16)          # 16-row multiple (bf16 sublanes)
    B_pad = _round_up(B, TB)
    return TB, B_pad


def actor_kernel(x_ref, w1_ref, b1_ref, w2_ref, b2_ref, wh_ref, bh_ref,
                 md_ref, mmu_ref, msg_ref, out_ref):
    # Trunk: (Linear -> Tanh) x 2.  bf16 matmul inputs, f32 accumulate.
    x = x_ref[...].astype(jnp.bfloat16)                         # (TB, state_dim)
    h1 = jnp.tanh(jnp.dot(x, w1_ref[...],
                          preferred_element_type=jnp.float32) + b1_ref[...])
    h2 = jnp.tanh(jnp.dot(h1.astype(jnp.bfloat16), w2_ref[...],
                          preferred_element_type=jnp.float32) + b2_ref[...])

    # Single fused head matmul. Columns: [0,d) logits | [d,d+c) mu | [d+c,d+2c) sigma.
    y = jnp.dot(h2.astype(jnp.bfloat16), wh_ref[...],
                preferred_element_type=jnp.float32) + bh_ref[...]

    mask_d = md_ref[...]                                        # (1, head_pad) f32
    mask_mu = mmu_ref[...]
    mask_sg = msg_ref[...]

    # Softmax over the discrete-logit columns only (non-d columns pushed to -1e30).
    logits = y + (mask_d - 1.0) * 1e30
    logits = logits - jnp.max(logits, axis=-1, keepdims=True)
    e = jnp.exp(logits)
    probs = e / jnp.sum(e, axis=-1, keepdims=True)   # exact divide: rows sum to 1

    # Sigmoid via tanh: one EUP op + FMA, no divide, no overflow.
    sig = 0.5 * jnp.tanh(0.5 * y) + 0.5

    # Softplus, numerically stable form.
    sp = jnp.maximum(y, 0.0) + jnp.log1p(jnp.exp(-jnp.abs(y)))

    # 3-FMA blend onto the lane-dense output slab.
    out_ref[...] = probs * mask_d + sig * mask_mu + sp * mask_sg


def pack_actor_params(p, state_dim, d_dim, c_dim, hidden_dim):
    """Host-side weight prep: pad out-dims to 128 lanes, fuse heads, cast bf16."""
    h_pad = _round_up(hidden_dim, LANE)
    head_dim = d_dim + 2 * c_dim
    head_pad = _round_up(head_dim, LANE)

    def pad2(a, rows, cols):
        out = jnp.zeros((rows, cols), jnp.float32)
        return out.at[:a.shape[0], :a.shape[1]].set(a)

    wh_full = jnp.concatenate([p["wd"], p["wmu"], p["ws"]], axis=1)
    bh_full = jnp.concatenate([p["bd"], p["bmu"], p["bs"]], axis=1)

    col = jnp.arange(head_pad)
    mask_d = (col < d_dim).astype(jnp.float32)[None, :]
    mask_mu = ((col >= d_dim) & (col < d_dim + c_dim)).astype(jnp.float32)[None, :]
    mask_sg = ((col >= d_dim + c_dim) & (col < head_dim)).astype(jnp.float32)[None, :]

    return {
        "w1": pad2(p["w1"], state_dim, h_pad).astype(jnp.bfloat16),   # no row padding
        "b1": pad2(p["b1"], 1, h_pad),
        "w2": pad2(p["w2"], h_pad, h_pad).astype(jnp.bfloat16),
        "b2": pad2(p["b2"], 1, h_pad),
        "wh": pad2(wh_full, h_pad, head_pad).astype(jnp.bfloat16),
        "bh": pad2(bh_full, 1, head_pad),
        "mask_d": mask_d, "mask_mu": mask_mu, "mask_sg": mask_sg,
        "dims": (state_dim, d_dim, c_dim, hidden_dim, h_pad, head_pad),
    }


def actor_forward(state, packed):
    """Returns (d_probs, mu, sigma), each (B, .) float32."""
    state_dim, d_dim, c_dim, _hidden, h_pad, head_pad = packed["dims"]
    B = state.shape[0]

    TB, B_pad = _choose_tile(B)
    if B_pad != B:
        x = jnp.zeros((B_pad, state_dim), state.dtype).at[:B].set(state)
    else:
        x = state

    const = lambda i: (0, 0)   # weights/biases/masks stay VMEM-resident across steps

    wbytes = (state_dim * h_pad + h_pad * h_pad + h_pad * head_pad) * 2 \
             + (2 * h_pad + 4 * head_pad) * 4
    cost = pl.CostEstimate(
        flops=2 * B_pad * (state_dim * h_pad + h_pad * h_pad + h_pad * head_pad),
        transcendentals=B_pad * (2 * h_pad + 4 * head_pad),
        bytes_accessed=B_pad * state_dim * 4 + wbytes + B_pad * head_pad * 4,
    )

    out = pl.pallas_call(
        actor_kernel,
        grid=(B_pad // TB,),
        in_specs=[
            pl.BlockSpec((TB, state_dim), lambda i: (i, 0)),   # last dim == full dim
            pl.BlockSpec((state_dim, h_pad), const),
            pl.BlockSpec((1, h_pad), const),
            pl.BlockSpec((h_pad, h_pad), const),
            pl.BlockSpec((1, h_pad), const),
            pl.BlockSpec((h_pad, head_pad), const),
            pl.BlockSpec((1, head_pad), const),
            pl.BlockSpec((1, head_pad), const),
            pl.BlockSpec((1, head_pad), const),
            pl.BlockSpec((1, head_pad), const),
        ],
        out_specs=pl.BlockSpec((TB, head_pad), lambda i: (i, 0)),
        out_shape=jax.ShapeDtypeStruct((B_pad, head_pad), jnp.float32),
        compiler_params=pltpu.CompilerParams(
            dimension_semantics=("parallel",)),
        cost_estimate=cost,
    )(x, packed["w1"], packed["b1"], packed["w2"], packed["b2"],
      packed["wh"], packed["bh"],
      packed["mask_d"], packed["mask_mu"], packed["mask_sg"])

    d_probs = out[:B, :d_dim]
    mu = out[:B, d_dim:d_dim + c_dim]
    sigma = out[:B, d_dim + c_dim:d_dim + 2 * c_dim]
    return d_probs, mu, sigma


def init_actor_params(key, state_dim, d_dim, c_dim, hidden_dim):
    """PyTorch-style init: U(-1/sqrt(fan_in), 1/sqrt(fan_in)); weights (in,out)."""
    def linear(k, fan_in, fan_out):
        kw, kb = jax.random.split(k)
        bound = 1.0 / jnp.sqrt(float(fan_in))
        w = jax.random.uniform(kw, (fan_in, fan_out), jnp.float32, -bound, bound)
        b = jax.random.uniform(kb, (1, fan_out), jnp.float32, -bound, bound)
        return w, b

    keys = jax.random.split(key, 5)
    w1, b1 = linear(keys[0], state_dim, hidden_dim)
    w2, b2 = linear(keys[1], hidden_dim, hidden_dim)
    wd, bd = linear(keys[2], hidden_dim, d_dim)
    wmu, bmu = linear(keys[3], hidden_dim, c_dim)
    ws, bs = linear(keys[4], hidden_dim, c_dim)
    return {"w1": w1, "b1": b1, "w2": w2, "b2": b2,
            "wd": wd, "bd": bd, "wmu": wmu, "bmu": bmu, "ws": ws, "bs": bs}


def actor_forward_ref(state, p):
    """Pure-JAX f32 reference of the PyTorch module."""
    h = jnp.tanh(state @ p["w1"] + p["b1"])
    h = jnp.tanh(h @ p["w2"] + p["b2"])
    d = jax.nn.softmax(h @ p["wd"] + p["bd"], axis=-1)
    mu = jax.nn.sigmoid(h @ p["wmu"] + p["bmu"])
    sigma = jax.nn.softplus(h @ p["ws"] + p["bs"])
    return d, mu, sigma


if __name__ == "__main__":
    B, STATE_DIM, D_DIM, C_DIM, HIDDEN = 8, 16, 8, 4, 32

    key = jax.random.PRNGKey(0)
    k_state, k_params = jax.random.split(key)
    state = jax.random.normal(k_state, (B, STATE_DIM), jnp.float32)
    params = init_actor_params(k_params, STATE_DIM, D_DIM, C_DIM, HIDDEN)

    packed = pack_actor_params(params, STATE_DIM, D_DIM, C_DIM, HIDDEN)
    d_probs, mu, sigma = actor_forward(state, packed)
    jax.block_until_ready((d_probs, mu, sigma))

    d_ref, mu_ref, sig_ref = actor_forward_ref(state, params)
    # bf16 MXU inputs -> relaxed (but tight-for-bf16) tolerances on values;
    # softmax normalization is exact-divide so it must be tight.
    assert d_probs.shape == (B, D_DIM) and mu.shape == (B, C_DIM) and sigma.shape == (B, C_DIM)
    assert jnp.allclose(d_probs, d_ref, atol=3e-2), "d_probs mismatch"
    assert jnp.allclose(mu, mu_ref, atol=3e-2), "mu mismatch"
    assert jnp.allclose(sigma, sig_ref, atol=3e-2), "sigma mismatch"
    assert jnp.allclose(jnp.sum(d_probs, axis=-1), 1.0, atol=1e-5), "softmax not normalized"
    assert bool(jnp.all(sigma > 0.0)), "softplus output must be positive"

    print("KERNEL_OK")
</pallas_src>

<mosaic_0001>
module attributes {stable_mosaic.version = 11 : i64} {
  func.func @actor_kernel(%arg0: i32, %arg1: memref<16x16xf32, #tpu.memory_space<vmem>>, %arg2: memref<16x128xbf16, #tpu.memory_space<vmem>>, %arg3: memref<1x128xf32, #tpu.memory_space<vmem>>, %arg4: memref<128x128xbf16, #tpu.memory_space<vmem>>, %arg5: memref<1x128xf32, #tpu.memory_space<vmem>>, %arg6: memref<128x128xbf16, #tpu.memory_space<vmem>>, %arg7: memref<1x128xf32, #tpu.memory_space<vmem>>, %arg8: memref<1x128xf32, #tpu.memory_space<vmem>>, %arg9: memref<1x128xf32, #tpu.memory_space<vmem>>, %arg10: memref<1x128xf32, #tpu.memory_space<vmem>>, %arg11: memref<16x128xf32, #tpu.memory_space<vmem>>) attributes {dimension_semantics = [#tpu.dimension_semantics<parallel>], iteration_bounds = array<i64: 1>, scalar_prefetch = 0 : i64, scratch_operands = 0 : i64, tpu.core_type = #tpu.core_type<tc>, window_params = [{transform_indices = @transform_0, window_bounds = array<i64: 16, 16>}, {pipeline_mode = #tpu.pipeline_mode<synchronous>, transform_indices = @transform_1, window_bounds = array<i64: 16, 128>}, {pipeline_mode = #tpu.pipeline_mode<synchronous>, transform_indices = @transform_2, window_bounds = array<i64: 1, 128>}, {pipeline_mode = #tpu.pipeline_mode<synchronous>, transform_indices = @transform_3, window_bounds = array<i64: 128, 128>}, {pipeline_mode = #tpu.pipeline_mode<synchronous>, transform_indices = @transform_4, window_bounds = array<i64: 1, 128>}, {pipeline_mode = #tpu.pipeline_mode<synchronous>, transform_indices = @transform_5, window_bounds = array<i64: 128, 128>}, {pipeline_mode = #tpu.pipeline_mode<synchronous>, transform_indices = @transform_6, window_bounds = array<i64: 1, 128>}, {pipeline_mode = #tpu.pipeline_mode<synchronous>, transform_indices = @transform_7, window_bounds = array<i64: 1, 128>}, {pipeline_mode = #tpu.pipeline_mode<synchronous>, transform_indices = @transform_8, window_bounds = array<i64: 1, 128>}, {pipeline_mode = #tpu.pipeline_mode<synchronous>, transform_indices = @transform_9, window_bounds = array<i64: 1, 128>}, {transform_indices = @transform_10, window_bounds = array<i64: 16, 128>}]} {
    %c0 = arith.constant 0 : index
    %c0_0 = arith.constant 0 : index
    %0 = vector.load %arg1[%c0, %c0_0] : memref<16x16xf32, #tpu.memory_space<vmem>>, vector<16x16xf32>
    %1 = arith.truncf %0 : vector<16x16xf32> to vector<16x16xbf16>
    %c0_1 = arith.constant 0 : index
    %c0_2 = arith.constant 0 : index
    %2 = vector.load %arg2[%c0_1, %c0_2] : memref<16x128xbf16, #tpu.memory_space<vmem>>, vector<16x128xbf16>
    %cst = arith.constant dense<0.000000e+00> : vector<16x128xf32>
    %3 = tpu.matmul %1, %2, %cst {dimension_numbers = #tpu.dot_dimension_numbers<[1], [0], [0], [1], [0, 0, 1, 1], [], []>} : vector<16x16xbf16>, vector<16x128xbf16>, vector<16x128xf32> -> vector<16x128xf32>
    %c0_3 = arith.constant 0 : index
    %c0_4 = arith.constant 0 : index
    %4 = vector.load %arg3[%c0_3, %c0_4] : memref<1x128xf32, #tpu.memory_space<vmem>>, vector<1x128xf32>
    %5 = vector.broadcast %4 : vector<1x128xf32> to vector<16x128xf32>
    %6 = arith.addf %3, %5 : vector<16x128xf32>
    %7 = math.tanh %6 : vector<16x128xf32>
    %8 = arith.truncf %7 : vector<16x128xf32> to vector<16x128xbf16>
    %c0_5 = arith.constant 0 : index
    %c0_6 = arith.constant 0 : index
    %9 = vector.load %arg4[%c0_5, %c0_6] : memref<128x128xbf16, #tpu.memory_space<vmem>>, vector<128x128xbf16>
    %cst_7 = arith.constant dense<0.000000e+00> : vector<16x128xf32>
    %10 = tpu.matmul %8, %9, %cst_7 {dimension_numbers = #tpu.dot_dimension_numbers<[1], [0], [0], [1], [0, 0, 1, 1], [], []>} : vector<16x128xbf16>, vector<128x128xbf16>, vector<16x128xf32> -> vector<16x128xf32>
    %c0_8 = arith.constant 0 : index
    %c0_9 = arith.constant 0 : index
    %11 = vector.load %arg5[%c0_8, %c0_9] : memref<1x128xf32, #tpu.memory_space<vmem>>, vector<1x128xf32>
    %12 = vector.broadcast %11 : vector<1x128xf32> to vector<16x128xf32>
    %13 = arith.addf %10, %12 : vector<16x128xf32>
    %14 = math.tanh %13 : vector<16x128xf32>
    %15 = arith.truncf %14 : vector<16x128xf32> to vector<16x128xbf16>
    %c0_10 = arith.constant 0 : index
    %c0_11 = arith.constant 0 : index
    %16 = vector.load %arg6[%c0_10, %c0_11] : memref<128x128xbf16, #tpu.memory_space<vmem>>, vector<128x128xbf16>
    %cst_12 = arith.constant dense<0.000000e+00> : vector<16x128xf32>
    %17 = tpu.matmul %15, %16, %cst_12 {dimension_numbers = #tpu.dot_dimension_numbers<[1], [0], [0], [1], [0, 0, 1, 1], [], []>} : vector<16x128xbf16>, vector<128x128xbf16>, vector<16x128xf32> -> vector<16x128xf32>
    %c0_13 = arith.constant 0 : index
    %c0_14 = arith.constant 0 : index
    %18 = vector.load %arg7[%c0_13, %c0_14] : memref<1x128xf32, #tpu.memory_space<vmem>>, vector<1x128xf32>
    %19 = vector.broadcast %18 : vector<1x128xf32> to vector<16x128xf32>
    %20 = arith.addf %17, %19 : vector<16x128xf32>
    %c0_15 = arith.constant 0 : index
    %c0_16 = arith.constant 0 : index
    %21 = vector.load %arg8[%c0_15, %c0_16] : memref<1x128xf32, #tpu.memory_space<vmem>>, vector<1x128xf32>
    %c0_17 = arith.constant 0 : index
    %c0_18 = arith.constant 0 : index
    %22 = vector.load %arg9[%c0_17, %c0_18] : memref<1x128xf32, #tpu.memory_space<vmem>>, vector<1x128xf32>
    %c0_19 = arith.constant 0 : index
    %c0_20 = arith.constant 0 : index
    %23 = vector.load %arg10[%c0_19, %c0_20] : memref<1x128xf32, #tpu.memory_space<vmem>>, vector<1x128xf32>
    %cst_21 = arith.constant 1.000000e+00 : f32
    %24 = vector.broadcast %cst_21 : f32 to vector<1x128xf32>
    %25 = arith.subf %21, %24 : vector<1x128xf32>
    %cst_22 = arith.constant 1.000000e+30 : f32
    %26 = vector.broadcast %cst_22 : f32 to vector<1x128xf32>
    %27 = arith.mulf %25, %26 : vector<1x128xf32>
    %28 = vector.broadcast %27 : vector<1x128xf32> to vector<16x128xf32>
    %29 = arith.addf %20, %28 : vector<16x128xf32>
    %cst_23 = arith.constant dense<0xFF800000> : vector<16xf32>
    %30 = vector.multi_reduction <maximumf>, %29, %cst_23 [1] : vector<16x128xf32> to vector<16xf32>
    %31 = vector.shape_cast %30 : vector<16xf32> to vector<16x1xf32>
    %32 = vector.broadcast %31 : vector<16x1xf32> to vector<16x128xf32>
    %33 = arith.subf %29, %32 : vector<16x128xf32>
    %34 = math.exp %33 : vector<16x128xf32>
    %cst_24 = arith.constant dense<0.000000e+00> : vector<16xf32>
    %35 = vector.multi_reduction <add>, %34, %cst_24 [1] : vector<16x128xf32> to vector<16xf32>
    %36 = vector.shape_cast %35 : vector<16xf32> to vector<16x1xf32>
    %37 = vector.broadcast %36 : vector<16x1xf32> to vector<16x128xf32>
    %38 = arith.divf %34, %37 : vector<16x128xf32>
    %cst_25 = arith.constant 5.000000e-01 : f32
    %39 = vector.broadcast %cst_25 : f32 to vector<16x128xf32>
    %40 = arith.mulf %39, %20 : vector<16x128xf32>
    %41 = math.tanh %40 : vector<16x128xf32>
    %cst_26 = arith.constant 5.000000e-01 : f32
    %42 = vector.broadcast %cst_26 : f32 to vector<16x128xf32>
    %43 = arith.mulf %42, %41 : vector<16x128xf32>
    %cst_27 = arith.constant 5.000000e-01 : f32
    %44 = vector.broadcast %cst_27 : f32 to vector<16x128xf32>
    %45 = arith.addf %43, %44 : vector<16x128xf32>
    %cst_28 = arith.constant 0.000000e+00 : f32
    %46 = vector.broadcast %cst_28 : f32 to vector<16x128xf32>
    %47 = arith.maximumf %20, %46 : vector<16x128xf32>
    %48 = math.absf %20 : vector<16x128xf32>
    %cst_29 = arith.constant 0.000000e+00 : f32
    %49 = vector.broadcast %cst_29 : f32 to vector<16x128xf32>
    %50 = arith.subf %49, %48 : vector<16x128xf32>
    %51 = math.exp %50 : vector<16x128xf32>
    %52 = math.log1p %51 : vector<16x128xf32>
    %53 = arith.addf %47, %52 : vector<16x128xf32>
    %54 = vector.broadcast %21 : vector<1x128xf32> to vector<16x128xf32>
    %55 = arith.mulf %38, %54 : vector<16x128xf32>
    %56 = vector.broadcast %22 : vector<1x128xf32> to vector<16x128xf32>
    %57 = arith.mulf %45, %56 : vector<16x128xf32>
    %58 = arith.addf %55, %57 : vector<16x128xf32>
    %59 = vector.broadcast %23 : vector<1x128xf32> to vector<16x128xf32>
    %60 = arith.mulf %53, %59 : vector<16x128xf32>
    %61 = arith.addf %58, %60 : vector<16x128xf32>
    %c0_30 = arith.constant 0 : index
    %c0_31 = arith.constant 0 : index
    %62 = vector.load %arg11[%c0_30, %c0_31] : memref<16x128xf32, #tpu.memory_space<vmem>>, vector<16x128xf32>
    tpu.vector_store %arg11[%c0_30, %c0_31], %61 {strides = array<i32>} : memref<16x128xf32, #tpu.memory_space<vmem>>, vector<16x128xf32>,
    return
  }
  func.func @transform_0(%arg0: i32) -> (i32, i32) {
    %c0_i32 = arith.constant 0 : i32
    %c0_i32_0 = arith.constant 0 : i32
    return %arg0, %c0_i32 : i32, i32
  }
  func.func @transform_1(%arg0: i32) -> (i32, i32) {
    %c0_i32 = arith.constant 0 : i32
    %c0_i32_0 = arith.constant 0 : i32
    %c0_i32_1 = arith.constant 0 : i32
    return %c0_i32, %c0_i32_0 : i32, i32
  }
  func.func @transform_2(%arg0: i32) -> (i32, i32) {
    %c0_i32 = arith.constant 0 : i32
    %c0_i32_0 = arith.constant 0 : i32
    %c0_i32_1 = arith.constant 0 : i32
    return %c0_i32, %c0_i32_0 : i32, i32
  }
  func.func @transform_3(%arg0: i32) -> (i32, i32) {
    %c0_i32 = arith.constant 0 : i32
    %c0_i32_0 = arith.constant 0 : i32
    %c0_i32_1 = arith.constant 0 : i32
    return %c0_i32, %c0_i32_0 : i32, i32
  }
  func.func @transform_4(%arg0: i32) -> (i32, i32) {
    %c0_i32 = arith.constant 0 : i32
    %c0_i32_0 = arith.constant 0 : i32
    %c0_i32_1 = arith.constant 0 : i32
    return %c0_i32, %c0_i32_0 : i32, i32
  }
  func.func @transform_5(%arg0: i32) -> (i32, i32) {
    %c0_i32 = arith.constant 0 : i32
    %c0_i32_0 = arith.constant 0 : i32
    %c0_i32_1 = arith.constant 0 : i32
    return %c0_i32, %c0_i32_0 : i32, i32
  }
  func.func @transform_6(%arg0: i32) -> (i32, i32) {
    %c0_i32 = arith.constant 0 : i32
    %c0_i32_0 = arith.constant 0 : i32
    %c0_i32_1 = arith.constant 0 : i32
    return %c0_i32, %c0_i32_0 : i32, i32
  }
  func.func @transform_7(%arg0: i32) -> (i32, i32) {
    %c0_i32 = arith.constant 0 : i32
    %c0_i32_0 = arith.constant 0 : i32
    %c0_i32_1 = arith.constant 0 : i32
    return %c0_i32, %c0_i32_0 : i32, i32
  }
  func.func @transform_8(%arg0: i32) -> (i32, i32) {
    %c0_i32 = arith.constant 0 : i32
    %c0_i32_0 = arith.constant 0 : i32
    %c0_i32_1 = arith.constant 0 : i32
    return %c0_i32, %c0_i32_0 : i32, i32
  }
  func.func @transform_9(%arg0: i32) -> (i32, i32) {
    %c0_i32 = arith.constant 0 : i32
    %c0_i32_0 = arith.constant 0 : i32
    %c0_i32_1 = arith.constant 0 : i32
    return %c0_i32, %c0_i32_0 : i32, i32
  }
  func.func @transform_10(%arg0: i32) -> (i32, i32) {
    %c0_i32 = arith.constant 0 : i32
    %c0_i32_0 = arith.constant 0 : i32
    return %arg0, %c0_i32 : i32, i32
  }
}

</mosaic_0001>

<llo_original>
// kernel: tpu_custom_call.1
$region0: #{tpu_custom_call.1}
  #allocation0 [shape = 'u32[]', space=smem, size = 0x4, offset = 0x4, fixed_abs, tag = 'smem constant byte address 0x4 - core index']
  #allocation1 [shape = 'u32[72,128]{1,0:T(1,128)}', space=vmem, size = 0x9000, scoped, tag = 'internal scratch']
  %s0 = inlined_call_operand.hbm [shape: f32[16,16], index: 0, kind: input, shape index: {}]
  %s1 = inlined_call_operand.hbm [shape: bf16[16,128], index: 1, kind: input, shape index: {}]
  %s2 = inlined_call_operand.vmem [shape: f32[1,128], index: 2, kind: input, shape index: {}]
  %s3 = inlined_call_operand.hbm [shape: bf16[128,128], index: 3, kind: input, shape index: {}]
  %s4 = inlined_call_operand.vmem [shape: f32[1,128], index: 4, kind: input, shape index: {}]
  %s5 = inlined_call_operand.hbm [shape: bf16[128,128], index: 5, kind: input, shape index: {}]
  %s6 = inlined_call_operand.vmem [shape: f32[1,128], index: 6, kind: input, shape index: {}]
  %s7 = inlined_call_operand.vmem [shape: f32[1,128], index: 7, kind: input, shape index: {}]
  %s8 = inlined_call_operand.vmem [shape: f32[1,128], index: 8, kind: input, shape index: {}]
  %s9 = inlined_call_operand.vmem [shape: f32[1,128], index: 9, kind: input, shape index: {}]
  %s10 = inlined_call_operand.hbm [shape: f32[16,128], index: 10, kind: output, shape index: {}]
  %s11 = sld [smem:[#allocation0]]
  $region66: #{tpu_custom_call.1} parent=0
    _
  %s13 = ssub.s32 1, %s11
  %s14 = scalar_select 0, %s13, %s11
  $region1: #{tpu_custom_call.1} parent=0
    #allocation2 [shape = 'u8[8192]{0}', space=vmem, size = 0x2000, scoped, tag = 'input window, operand 0, single buffered']
    #allocation3 [shape = 's32[1]{0}', space=sflag, size = 0x4, scoped, tag = 'scoped memory for tpu_custom_call.1']
    #allocation4 [shape = 's32[1]{0}', space=sflag, size = 0x4, scoped, tag = 'scoped memory for tpu_custom_call.1']
    #allocation5 [shape = 'u8[4096]{0}', space=vmem, size = 0x1000, scoped, tag = 'input window, operand 1, single buffered']
    #allocation6 [shape = 's32[1]{0}', space=sflag, size = 0x4, scoped, tag = 'scoped memory for tpu_custom_call.1']
    #allocation7 [shape = 'u8[32768]{0}', space=vmem, size = 0x8000, scoped, tag = 'input window, operand 3, single buffered']
    #allocation8 [shape = 'u8[32768]{0}', space=vmem, size = 0x8000, scoped, tag = 'input window, operand 5, single buffered']
    #allocation9 [shape = 's32[1]{0}', space=sflag, size = 0x4, scoped, tag = 'scoped memory for tpu_custom_call.1']
    #allocation10 [shape = 'u8[8192]{0}', space=vmem, size = 0x2000, scoped, tag = 'output window, operand 0, single buffered']
    %15 = vsyncpa [#allocation3], 0
    %16 = vsyncpa [#allocation6], 0
    %17 = vsyncpa [#allocation9], 0
    %18 = vsyncpa [#allocation4], 0
    // Predicated region
    $region2: #{tpu_custom_call.1} parent=1 // pred_check
      _
    $region3: #{tpu_custom_call.1} parent=1 // pred_check_branch
      %20 = sbr.rel (0) target = $region5
    $region4: #{tpu_custom_call.1} parent=1 // pred_region
      %22 = vsyncadd [#allocation3], 0
      %s23 = sshll.u32 %s0, 4
      %s24 = int_to_ptr.hbm [resolvable:$true] %s23
      %s25 = sshll.u32 [#allocation2], 4
      %s26 = int_to_ptr.vmem [resolvable:$true] %s25
      %31 = dma.hbm_to_vmem [thread:$0]  %s24, 256, %s26, [#allocation3], 128, 128, 8
    $region5: #{tpu_custom_call.1} parent=1 // pred_fallthru
      _
    // Predicated region
    $region6: #{tpu_custom_call.1} parent=1 // pred_check
      _
    $region7: #{tpu_custom_call.1} parent=1 // pred_check_branch
      %33 = sbr.rel (0) target = $region9
    $region8: #{tpu_custom_call.1} parent=1 // pred_region
      %35 = vsyncadd [#allocation6], 0
      %s36 = sshll.u32 %s1, 4
      %s37 = int_to_ptr.hbm [resolvable:$true] %s36
      %s38 = sshll.u32 [#allocation5], 4
      %s39 = int_to_ptr.vmem [resolvable:$true] %s38
      %44 = dma.hbm_to_vmem [thread:$0]  %s37, 128, %s39, [#allocation6], 64, 64, 4
    $region9: #{tpu_custom_call.1} parent=1 // pred_fallthru
      _
    // Predicated region
    $region10: #{tpu_custom_call.1} parent=1 // pred_check
      _
    $region11: #{tpu_custom_call.1} parent=1 // pred_check_branch
      %46 = sbr.rel (0) target = $region13
    $region12: #{tpu_custom_call.1} parent=1 // pred_region
      _
    $region13: #{tpu_custom_call.1} parent=1 // pred_fallthru
      _
    // Predicated region
    $region14: #{tpu_custom_call.1} parent=1 // pred_check
      _
    $region15: #{tpu_custom_call.1} parent=1 // pred_check_branch
      %48 = sbr.rel (0) target = $region17
    $region16: #{tpu_custom_call.1} parent=1 // pred_region
      %50 = vsyncadd [#allocation6], 0
      %s51 = sshll.u32 %s3, 4
      %s52 = int_to_ptr.hbm [resolvable:$true] %s51
      %s53 = sshll.u32 [#allocation7], 4
      %s54 = int_to_ptr.vmem [resolvable:$true] %s53
      %59 = dma.hbm_to_vmem [thread:$0]  %s52, 1024, %s54, [#allocation6], 64, 64, 4
    $region17: #{tpu_custom_call.1} parent=1 // pred_fallthru
      _
    // Predicated region
    $region18: #{tpu_custom_call.1} parent=1 // pred_check
      _
    $region19: #{tpu_custom_call.1} parent=1 // pred_check_branch
      %61 = sbr.rel (0) target = $region21
    $region20: #{tpu_custom_call.1} parent=1 // pred_region
      _
    $region21: #{tpu_custom_call.1} parent=1 // pred_fallthru
      _
    // Predicated region
    $region22: #{tpu_custom_call.1} parent=1 // pred_check
      _
    $region23: #{tpu_custom_call.1} parent=1 // pred_check_branch
      %63 = sbr.rel (0) target = $region25
    $region24: #{tpu_custom_call.1} parent=1 // pred_region
      %65 = vsyncadd [#allocation9], 0
      %s66 = sshll.u32 %s5, 4
      %s67 = int_to_ptr.hbm [resolvable:$true] %s66
      %s68 = sshll.u32 [#allocation8], 4
      %s69 = int_to_ptr.vmem [resolvable:$true] %s68
      %74 = dma.hbm_to_vmem [thread:$0]  %s67, 1024, %s69, [#allocation9], 64, 64, 4
    $region25: #{tpu_custom_call.1} parent=1 // pred_fallthru
      _
    // Predicated region
    $region26: #{tpu_custom_call.1} parent=1 // pred_check
      _
    $region27: #{tpu_custom_call.1} parent=1 // pred_check_branch
      %76 = sbr.rel (0) target = $region29
    $region28: #{tpu_custom_call.1} parent=1 // pred_region
      _
    $region29: #{tpu_custom_call.1} parent=1 // pred_fallthru
      _
    // Predicated region
    $region30: #{tpu_custom_call.1} parent=1 // pred_check
      _
    $region31: #{tpu_custom_call.1} parent=1 // pred_check_branch
      %78 = sbr.rel (0) target = $region33
    $region32: #{tpu_custom_call.1} parent=1 // pred_region
      _
    $region33: #{tpu_custom_call.1} parent=1 // pred_fallthru
      _
    // Predicated region
    $region34: #{tpu_custom_call.1} parent=1 // pred_check
      _
    $region35: #{tpu_custom_call.1} parent=1 // pred_check_branch
      %80 = sbr.rel (0) target = $region37
    $region36: #{tpu_custom_call.1} parent=1 // pred_region
      _
    $region37: #{tpu_custom_call.1} parent=1 // pred_fallthru
      _
    // Predicated region
    $region38: #{tpu_custom_call.1} parent=1 // pred_check
      _
    $region39: #{tpu_custom_call.1} parent=1 // pred_check_branch
      %82 = sbr.rel (0) target = $region41
    $region40: #{tpu_custom_call.1} parent=1 // pred_region
      _
    $region41: #{tpu_custom_call.1} parent=1 // pred_fallthru
      _
    // Predicated region
    $region42: #{tpu_custom_call.1} parent=1 // pred_check
      _
    $region43: #{tpu_custom_call.1} parent=1 // pred_check_branch
      %84 = sbr.rel (0) target = $region45
    $region44: #{tpu_custom_call.1} parent=1 // pred_region
      %86 = dma.done [#allocation3], 256
    $region45: #{tpu_custom_call.1} parent=1 // pred_fallthru
      _
    // Predicated region
    $region46: #{tpu_custom_call.1} parent=1 // pred_check
      _
    $region47: #{tpu_custom_call.1} parent=1 // pred_check_branch
      %88 = sbr.rel (0) target = $region49
    $region48: #{tpu_custom_call.1} parent=1 // pred_region
      %90 = dma.done [#allocation6], 128
    $region49: #{tpu_custom_call.1} parent=1 // pred_fallthru
      _
    // Predicated region
    $region50: #{tpu_custom_call.1} parent=1 // pred_check
      _
    $region51: #{tpu_custom_call.1} parent=1 // pred_check_branch
      %92 = sbr.rel (0) target = $region53
    $region52: #{tpu_custom_call.1} parent=1 // pred_region
      %94 = dma.done [#allocation6], 1024
    $region53: #{tpu_custom_call.1} parent=1 // pred_fallthru
      _
    // Predicated region
    $region54: #{tpu_custom_call.1} parent=1 // pred_check
      _
    $region55: #{tpu_custom_call.1} parent=1 // pred_check_branch
      %96 = sbr.rel (0) target = $region57
    $region56: #{tpu_custom_call.1} parent=1 // pred_region
      %98 = dma.done [#allocation9], 1024
    $region57: #{tpu_custom_call.1} parent=1 // pred_fallthru
      _
    %v100 = vld [vmem:[#allocation2] sm:$0xff]
    %v101 = vld [vmem:[#allocation2 + $0x8] sm:$0xff]
    %v102 = vpack.c.bf16 %v101, %v100
    %v103 = vld [vmem:[#allocation5] sm:$0xf]
    %v104 = vld [vmem:[#allocation5 + $0x4] sm:$0xf]
    %v105 = vld [vmem:[%s2] sm:$0x1]
    %v107 = vperm.slane %v105, 0
    %v111 = vunpack.c.l.b16 %v103
    %v112 = vunpack.c.l.b16 %v104
    %v113 = vpack.c.b16 %v112, %v111
    %vm115 = vcmask 130048
    %v117 = vsel %vm115, %v102, 0
    %119 = vmatpush.bf16.msra.mxu0 0
    %120 = vmatpush.bf16.msra.mxu0 0
    %121 = vmatpush.bf16.msra.mxu0 0
    %122 = vmatpush.bf16.msra.mxu0 0
    %123 = vmatpush.bf16.msra.mxu0 0
    %124 = vmatpush.bf16.msra.mxu0 0
    %125 = vmatpush.bf16.msra.mxu0 0
    %126 = vmatpush.bf16.msra.mxu0 %v113
    %127 = vmatmul.bf16.gmra.mxu0 %v117
    %v128 = vpop.f32.mrf.mxu0
    %v129 = vadd.f32 %v107, %v128
    %v130 = vpop.f32.mrf.mxu0
    %v131 = vadd.f32 %v107, %v130
    %132 = vdwg.mxu0
    %v133 = vtanh.pop %v129
    %v134 = vtanh.pop %v131
    %v135 = vpack.c.bf16 %v134, %v133
    %v136 = vld [vmem:[#allocation7] sm:$0xf]
    %v137 = vld [vmem:[#allocation7 + $0x4] sm:$0xf]
    %v138 = vld [vmem:[#allocation7 + $0x8] sm:$0xf]
    %v139 = vld [vmem:[#allocation7 + $0xc] sm:$0xf]
    %v140 = vld [vmem:[#allocation7 + $0x10] sm:$0xf]
    %v141 = vld [vmem:[#allocation7 + $0x14] sm:$0xf]
    %v142 = vld [vmem:[#allocation7 + $0x18] sm:$0xf]
    %v143 = vld [vmem:[#allocation7 + $0x1c] sm:$0xf]
    %v144 = vld [vmem:[#allocation7 + $0x20] sm:$0xf]
    %v145 = vld [vmem:[#allocation7 + $0x24] sm:$0xf]
    %v146 = vld [vmem:[#allocation7 + $0x28] sm:$0xf]
    %v147 = vld [vmem:[#allocation7 + $0x2c] sm:$0xf]
    %v148 = vld [vmem:[#allocation7 + $0x30] sm:$0xf]
    %v149 = vld [vmem:[#allocation7 + $0x34] sm:$0xf]
    %v150 = vld [vmem:[#allocation7 + $0x38] sm:$0xf]
    %v151 = vld [vmem:[#allocation7 + $0x3c] sm:$0xf]
    %v152 = vld [vmem:[%s4] sm:$0x1]
    %v154 = vperm.slane %v152, 0
    %v172 = vunpack.c.l.b16 %v136
    %v173 = vunpack.c.l.b16 %v137
    %v174 = vunpack.c.l.b16 %v138
    %v175 = vunpack.c.l.b16 %v139
    %v176 = vunpack.c.l.b16 %v140
    %v177 = vunpack.c.l.b16 %v141
    %v178 = vunpack.c.l.b16 %v142
    %v179 = vunpack.c.l.b16 %v143
    %v180 = vunpack.c.l.b16 %v144
    %v181 = vunpack.c.l.b16 %v145
    %v182 = vunpack.c.l.b16 %v146
    %v183 = vunpack.c.l.b16 %v147
    %v184 = vunpack.c.l.b16 %v148
    %v185 = vunpack.c.l.b16 %v149
    %v186 = vunpack.c.l.b16 %v150
    %v187 = vunpack.c.l.b16 %v151
    %v188 = vpack.c.b16 %v173, %v172
    %v189 = vpack.c.b16 %v175, %v174
    %v190 = vpack.c.b16 %v177, %v176
    %v191 = vpack.c.b16 %v179, %v178
    %v192 = vpack.c.b16 %v181, %v180
    %v193 = vpack.c.b16 %v183, %v182
    %v194 = vpack.c.b16 %v185, %v184
    %v195 = vpack.c.b16 %v187, %v186
    %204 = vmatpush.bf16.msra.mxu0 %v195
    %205 = vmatpush.bf16.msra.mxu0 %v194
    %206 = vmatpush.bf16.msra.mxu0 %v193
    %207 = vmatpush.bf16.msra.mxu0 %v192
    %208 = vmatpush.bf16.msra.mxu0 %v191
    %209 = vmatpush.bf16.msra.mxu0 %v190
    %210 = vmatpush.bf16.msra.mxu0 %v189
    %211 = vmatpush.bf16.msra.mxu0 %v188
    %212 = vmatmul.bf16.gmra.mxu0 %v135
    %v213 = vpop.f32.mrf.mxu0
    %v214 = vadd.f32 %v154, %v213
    %v215 = vpop.f32.mrf.mxu0
    %v216 = vadd.f32 %v154, %v215
    %217 = vdwg.mxu0
    %v218 = vtanh.pop %v214
    %v219 = vtanh.pop %v216
    %v220 = vpack.c.bf16 %v219, %v218
    %v221 = vld [vmem:[#allocation8] sm:$0xf]
    %v222 = vld [vmem:[#allocation8 + $0x4] sm:$0xf]
    %v223 = vld [vmem:[#allocation8 + $0x8] sm:$0xf]
    %v224 = vld [vmem:[#allocation8 + $0xc] sm:$0xf]
    %v225 = vld [vmem:[#allocation8 + $0x10] sm:$0xf]
    %v226 = vld [vmem:[#allocation8 + $0x14] sm:$0xf]
    %v227 = vld [vmem:[#allocation8 + $0x18] sm:$0xf]
    %v228 = vld [vmem:[#allocation8 + $0x1c] sm:$0xf]
    %v229 = vld [vmem:[#allocation8 + $0x20] sm:$0xf]
    %v230 = vld [vmem:[#allocation8 + $0x24] sm:$0xf]
    %v231 = vld [vmem:[#allocation8 + $0x28] sm:$0xf]
    %v232 = vld [vmem:[#allocation8 + $0x2c] sm:$0xf]
    %v233 = vld [vmem:[#allocation8 + $0x30] sm:$0xf]
    %v234 = vld [vmem:[#allocation8 + $0x34] sm:$0xf]
    %v235 = vld [vmem:[#allocation8 + $0x38] sm:$0xf]
    %v236 = vld [vmem:[#allocation8 + $0x3c] sm:$0xf]
    %v237 = vld [vmem:[%s6] sm:$0x1]
    %v239 = vperm.slane %v237, 0
    %v257 = vunpack.c.l.b16 %v221
    %v258 = vunpack.c.l.b16 %v222
    %v259 = vunpack.c.l.b16 %v223
    %v260 = vunpack.c.l.b16 %v224
    %v261 = vunpack.c.l.b16 %v225
    %v262 = vunpack.c.l.b16 %v226
    %v263 = vunpack.c.l.b16 %v227
    %v264 = vunpack.c.l.b16 %v228
    %v265 = vunpack.c.l.b16 %v229
    %v266 = vunpack.c.l.b16 %v230
    %v267 = vunpack.c.l.b16 %v231
    %v268 = vunpack.c.l.b16 %v232
    %v269 = vunpack.c.l.b16 %v233
    %v270 = vunpack.c.l.b16 %v234
    %v271 = vunpack.c.l.b16 %v235
    %v272 = vunpack.c.l.b16 %v236
    %v273 = vpack.c.b16 %v258, %v257
    %v274 = vpack.c.b16 %v260, %v259
    %v275 = vpack.c.b16 %v262, %v261
    %v276 = vpack.c.b16 %v264, %v263
    %v277 = vpack.c.b16 %v266, %v265
    %v278 = vpack.c.b16 %v268, %v267
    %v279 = vpack.c.b16 %v270, %v269
    %v280 = vpack.c.b16 %v272, %v271
    %289 = vmatpush.bf16.msra.mxu0 %v280
    %290 = vmatpush.bf16.msra.mxu0 %v279
    %291 = vmatpush.bf16.msra.mxu0 %v278
    %292 = vmatpush.bf16.msra.mxu0 %v277
    %293 = vmatpush.bf16.msra.mxu0 %v276
    %294 = vmatpush.bf16.msra.mxu0 %v275
    %295 = vmatpush.bf16.msra.mxu0 %v274
    %296 = vmatpush.bf16.msra.mxu0 %v273
    %297 = vmatmul.bf16.gmra.mxu0 %v220
    %v298 = vpop.f32.mrf.mxu0
    %v299 = vadd.f32 %v239, %v298
    %v300 = vpop.f32.mrf.mxu0
    %v301 = vadd.f32 %v239, %v300
    %302 = vdwg.mxu0
    %v303 = vld [vmem:[%s7] sm:$0x1]
    %v304 = vld [vmem:[%s8] sm:$0x1]
    %v305 = vld [vmem:[%s9] sm:$0x1]
    %v306 = vsub.f32 %v303, 1.0
    %v307 = vmul.f32 %v306, 1e+30
    %v309 = vperm.slane %v307, 0
    %v311 = vadd.f32 %v299, %v309
    %v312 = vadd.f32 %v301, %v309
    %313 = vmax.xlane.f32.xlu0 %v311
    %v314 = vpop.xlane.xlu0 %313
    %315 = vmax.xlane.f32.xlu0 %v312
    %v316 = vpop.xlane.xlu0 %315
    %v317 = vsub.f32 %v311, %v314
    %v318 = vsub.f32 %v312, %v316
    %v319 = vmul.f32 %v317, 1.442695
    %v320 = vpow.pop %v319
    %v321 = vmul.f32 %v318, 1.442695
    %v322 = vpow.pop %v321
    %323 = vadd.xlane.f32.xlu0 %v320
    %v324 = vpop.xlane.xlu0 %323
    %325 = vadd.xlane.f32.xlu0 %v322
    %v326 = vpop.xlane.xlu0 %325
    %v327 = vrcp.pop %v324
    %v328 = vmul.f32 %v324, %v327
    %v329 = vsub.f32 1.0, %v328
    %v330 = vmul.f32 %v327, %v329
    %v331 = vadd.f32 %v327, %v330
    %vm332 = vweird.f32 %v324
    %vm333 = vweird.f32 %v327
    %vm334 = vmor %vm332, %vm333
    %v335 = vsel %vm334, %v327, %v331
    %v336 = vand.u32 2147483647, %v324
    %vm337 = vcmp.eq.f32.partialorder %v336, 8.507059e+37
    %v338 = vand.u32 %v324, 2147483648
    %v339 = vor.u32 1.1754944e-38, %v338
    %v340 = vsel %vm337, %v339, %v335
    %v341 = vmul.f32 %v320, %v340
    %v342 = vrcp.pop %v326
    %v343 = vmul.f32 %v326, %v342
    %v344 = vsub.f32 1.0, %v343
    %v345 = vmul.f32 %v342, %v344
    %v346 = vadd.f32 %v342, %v345
    %vm347 = vweird.f32 %v326
    %vm348 = vweird.f32 %v342
    %vm349 = vmor %vm347, %vm348
    %v350 = vsel %vm349, %v342, %v346
    %v351 = vand.u32 2147483647, %v326
    %vm352 = vcmp.eq.f32.partialorder %v351, 8.507059e+37
    %v353 = vand.u32 %v326, 2147483648
    %v354 = vor.u32 1.1754944e-38, %v353
    %v355 = vsel %vm352, %v354, %v350
    %v356 = vmul.f32 %v322, %v355
    %v357 = vmul.f32 %v299, 0.5
    %v358 = vmul.f32 %v301, 0.5
    %v359 = vtanh.pop %v357
    %v360 = vtanh.pop %v358
    %v361 = vmul.f32 %v359, 0.5
    %v362 = vmul.f32 %v360, 0.5
    %v363 = vadd.f32 %v361, 0.5
    %v364 = vadd.f32 %v362, 0.5
    %v365 = vmax.f32 %v299, 0.0
    %v366 = vmax.f32 %v301, 0.0
    %v367 = vand.u32 2147483647, %v299
    %v368 = vand.u32 2147483647, %v301
    %v369 = vsub.f32 0.0, %v367
    %v370 = vsub.f32 0.0, %v368
    %v371 = vmul.f32 %v369, 1.442695
    %v372 = vpow.pop %v371
    %v373 = vmul.f32 %v370, 1.442695
    %v374 = vpow.pop %v373
    %v375 = vadd.f32 %v372, 1.0
    %v376 = vlog2.pop %v375
    %v377 = vmul.f32 %v376, 0.6931472
    %v378 = vmul.f32 -0.5, %v372
    %v379 = vadd.f32 %v378, 1.0
    %v380 = vmul.f32 %v379, %v372
    %v381 = vand.u32 2147483647, %v372
    %vm382 = vcmp.lt.f32.partialorder %v381, 0.0004427343
    %v383 = vsel %vm382, %v380, %v377
    %v384 = vadd.f32 %v374, 1.0
    %v385 = vlog2.pop %v384
    %v386 = vmul.f32 %v385, 0.6931472
    %v387 = vmul.f32 -0.5, %v374
    %v388 = vadd.f32 %v387, 1.0
    %v389 = vmul.f32 %v388, %v374
    %v390 = vand.u32 2147483647, %v374
    %vm391 = vcmp.lt.f32.partialorder %v390, 0.0004427343
    %v392 = vsel %vm391, %v389, %v386
    %v393 = vadd.f32 %v365, %v383
    %v394 = vadd.f32 %v366, %v392
    %v396 = vperm.slane %v303, 0
    %v398 = vmul.f32 %v341, %v396
    %v399 = vmul.f32 %v356, %v396
    %v401 = vperm.slane %v304, 0
    %v403 = vmul.f32 %v363, %v401
    %v404 = vmul.f32 %v364, %v401
    %v405 = vadd.f32 %v398, %v403
    %v406 = vadd.f32 %v399, %v404
    %v408 = vperm.slane %v305, 0
    %v410 = vmul.f32 %v393, %v408
    %v411 = vmul.f32 %v394, %v408
    %v412 = vadd.f32 %v405, %v410
    %v413 = vadd.f32 %v406, %v411
    %414 = vst [vmem:[#allocation10] sm:$0xff] %v412
    %415 = vst [vmem:[#allocation10 + $0x8] sm:$0xff] %v413
    // Predicated region
    $region58: #{tpu_custom_call.1} parent=1 // pred_check
      _
    $region59: #{tpu_custom_call.1} parent=1 // pred_check_branch
      %417 = sbr.rel (0) target = $region61
    $region60: #{tpu_custom_call.1} parent=1 // pred_region
      %419 = vsyncadd [#allocation4], 0
      %s420 = sshll.u32 [#allocation10], 4
      %s421 = int_to_ptr.vmem [resolvable:$true] %s420
      %s422 = sshll.u32 %s10, 4
      %s423 = int_to_ptr.hbm [resolvable:$true] %s422
      %428 = dma.vmem_to_hbm [thread:$0]  %s421, 256, %s423, [#allocation4], 128, 128, 8
    $region61: #{tpu_custom_call.1} parent=1 // pred_fallthru
      _
    // Predicated region
    $region62: #{tpu_custom_call.1} parent=1 // pred_check
      _
    $region63: #{tpu_custom_call.1} parent=1 // pred_check_branch
      %430 = sbr.rel (0) target = $region65
    $region64: #{tpu_custom_call.1} parent=1 // pred_region
      %432 = dma.done [#allocation4], 256
    $region65: #{tpu_custom_call.1} parent=1 // pred_fallthru
      _
    %433 = vsyncpa [#allocation3], 1
    %434 = vsyncpa [#allocation6], 1
    %435 = vsyncpa [#allocation9], 1
    %436 = vsyncpa [#allocation4], 1

</llo_original>
